<compile_context>
chip_gen: v5e
topology: v5e:2x2
jax: 0.10.0
libtpu: 0.0.40
codegen_flags: <defaults>
</compile_context>

<pallas_src>
import functools

import jax
import jax.numpy as jnp
from jax.experimental import pallas as pl
from jax.experimental.pallas import tpu as pltpu

# Explicit scoped-VMEM ceiling (default is 32 MiB); safe on v5e/v6e/v7x.
_VMEM_LIMIT = 64 * 1024 * 1024


def _pick_tile(dim, candidates):
    for c in candidates:
        if c <= dim and dim % c == 0:
            return c
    return dim


def _layer_norm(x, gamma, beta, eps=1e-5):
    # x: (rows, D) f32; gamma/beta: (1, D). Biased variance, same as torch.nn.LayerNorm.
    mean = jnp.mean(x, axis=-1, keepdims=True)
    xc = x - mean
    var = jnp.mean(xc * xc, axis=-1, keepdims=True)
    return xc * jax.lax.rsqrt(var + eps) * gamma + beta


# -----------------------------------------------------------------------------
# Kernel 1: fused QKV projection, x(tr, D) @ Wqkv(D, 3D) + bqkv -> (tr, 3D) bf16.
# -----------------------------------------------------------------------------
def qkv_proj_kernel(x_ref, w_ref, b_ref, qkv_ref):
    x = x_ref[...].astype(jnp.bfloat16)                 # bf16 MXU inputs, f32 accumulation
    y = jnp.dot(x, w_ref[...], preferred_element_type=jnp.float32) + b_ref[...]
    qkv_ref[...] = y.astype(qkv_ref.dtype)              # single wide lane-dense store


# -----------------------------------------------------------------------------
# Kernel 2: flash attention per (batch, head, q-tile); kv is the reduction axis.
#   Q/K/V: (B, H, S, hd); stats scratch is lane-replicated (tq, 128) f32.
# -----------------------------------------------------------------------------
def flash_attn_kernel(q_ref, k_ref, v_ref, ctx_ref, m_ref, l_ref, acc_ref, *, scale):
    ki = pl.program_id(3)

    @pl.when(ki == 0)
    def _init():
        m_ref[...] = jnp.full(m_ref.shape, -jnp.inf, m_ref.dtype)
        l_ref[...] = jnp.zeros(l_ref.shape, l_ref.dtype)
        acc_ref[...] = jnp.zeros(acc_ref.shape, acc_ref.dtype)

    q = q_ref[0, 0]                                     # (tq, hd)  bf16
    k = k_ref[0, 0]                                     # (tkv, hd) bf16
    v = v_ref[0, 0]                                     # (tkv, hd) bf16

    # (tq, hd) x (tkv, hd)^T -> (tq, tkv), f32 accumulation on the MXU.
    s = jax.lax.dot_general(q, k, (((1,), (1,)), ((), ())),
                            preferred_element_type=jnp.float32) * scale

    m_prev = m_ref[...]                                 # (tq, 128) lane-replicated
    s_max = jnp.max(s, axis=-1, keepdims=True)          # (tq, 1)
    m_new = jnp.maximum(m_prev, s_max)                  # (tq, 128) lane-replicated
    alpha = jnp.exp(m_prev - m_new)                     # same vreg count as (tq, 1)
    m_new_c = jnp.max(m_new, axis=-1, keepdims=True)    # (tq, 1) (any lane; replicated)
    p = jnp.exp(s - m_new_c)                            # (tq, tkv)

    # Lane-dense (unmasked) stores of the running stats.
    l_ref[...] = alpha * l_ref[...] + jnp.sum(p, axis=-1, keepdims=True)
    alpha_c = jnp.max(alpha, axis=-1, keepdims=True)    # (tq, 1)
    acc_ref[...] = alpha_c * acc_ref[...] + jnp.dot(
        p.astype(jnp.bfloat16), v, preferred_element_type=jnp.float32)
    m_ref[...] = m_new

    @pl.when(ki == pl.num_programs(3) - 1)
    def _finalize():
        l_c = jnp.max(l_ref[...], axis=-1, keepdims=True)
        inv_l = pl.reciprocal(l_c, approx=True)          # EUP (free slot)
        ctx_ref[0, 0] = (acc_ref[...] * inv_l).astype(ctx_ref.dtype)


# -----------------------------------------------------------------------------
# Kernel 3: fused O-projection + residual/LN1 + Dff-tiled FFN + residual/LN2.
#   Grid (row_tiles, Dff_tiles); the Dff axis is the trailing reduction axis.
# -----------------------------------------------------------------------------
def oproj_ffn_kernel(x_ref, ctx_ref, wo_ref, bo_ref, g1_ref, be1_ref,
                     w1_ref, b1_ref, w2_ref, b2_ref, g2_ref, be2_ref,
                     out_ref, x1_ref, acc_ref):
    f = pl.program_id(1)

    @pl.when(f == 0)
    def _oproj_ln1():
        # Single D-deep contraction for the output projection (full MXU depth).
        attn = jnp.dot(ctx_ref[...], wo_ref[...],
                       preferred_element_type=jnp.float32) + bo_ref[...]
        x = x_ref[...].astype(jnp.float32)
        x1_ref[...] = _layer_norm(x + attn, g1_ref[...], be1_ref[...])
        acc_ref[...] = jnp.zeros(acc_ref.shape, acc_ref.dtype)

    # FFN partial over this Dff tile: relu(x1 @ w1[:, f]) @ w2[f, :].
    hid = jnp.dot(x1_ref[...].astype(jnp.bfloat16), w1_ref[...],
                  preferred_element_type=jnp.float32) + b1_ref[...]
    hid = jnp.maximum(hid, 0.0)
    acc_ref[...] += jnp.dot(hid.astype(jnp.bfloat16), w2_ref[...],
                            preferred_element_type=jnp.float32)

    @pl.when(f == pl.num_programs(1) - 1)
    def _ln2():
        y = x1_ref[...] + acc_ref[...] + b2_ref[...]
        out_ref[...] = _layer_norm(y, g2_ref[...], be2_ref[...]).astype(out_ref.dtype)


def transformer_layer(x, params, n_heads, *, tq=None, tkv=None, rows_tile=None,
                      dff_tile=None):
    B, S, D = x.shape
    Dff = params['w1'].shape[1]
    hd = D // n_heads
    assert n_heads * hd == D, "d_model must be divisible by n_heads"

    bf16 = jnp.bfloat16
    # Fused QKV weights/bias: one (D, 3D) matmul instead of three.
    wqkv = jnp.concatenate([params['wq'], params['wk'], params['wv']], axis=1).astype(bf16)
    bqkv = jnp.concatenate([params['bq'], params['bk'], params['bv']], axis=1)   # (1, 3D) f32
    wo = params['wo'].astype(bf16)
    w1 = params['w1'].astype(bf16)
    w2 = params['w2'].astype(bf16)

    R = B * S
    x2d = x.reshape(R, D)

    # ---------------- Kernel 1: fused QKV projection over row tiles ----------------
    tr = rows_tile or _pick_tile(R, (1024, 512, 256, 128, 64, 32, 16, 8))
    assert R % tr == 0
    qkv2d = pl.pallas_call(
        qkv_proj_kernel,
        out_shape=jax.ShapeDtypeStruct((R, 3 * D), bf16),
        grid_spec=pltpu.PrefetchScalarGridSpec(
            num_scalar_prefetch=0,
            grid=(R // tr,),
            in_specs=[pl.BlockSpec((tr, D), lambda i: (i, 0)),
                      pl.BlockSpec((D, 3 * D), lambda i: (0, 0)),
                      pl.BlockSpec((1, 3 * D), lambda i: (0, 0))],
            out_specs=pl.BlockSpec((tr, 3 * D), lambda i: (i, 0)),
        ),
        compiler_params=pltpu.CompilerParams(
            dimension_semantics=("parallel",), vmem_limit_bytes=_VMEM_LIMIT),
        cost_estimate=pl.CostEstimate(
            flops=2 * R * D * 3 * D, transcendentals=0,
            bytes_accessed=R * D * 4 + D * 3 * D * 2 + R * 3 * D * 2),
    )(x2d, wqkv, bqkv)

    # Per-head layout (B, H, S, hd): hd is the full last dim (no in-kernel lane slicing).
    qkv = qkv2d.reshape(B, S, 3, n_heads, hd).transpose(2, 0, 3, 1, 4)   # (3, B, H, S, hd)
    q, k, v = qkv[0], qkv[1], qkv[2]

    # ---------------- Kernel 2: flash attention, grid (B, H, nq, nkv) ----------------
    # Grow tq preferentially (K/V are re-fetched per q tile); keep score tiles bounded.
    tq = tq or _pick_tile(S, (256, 128, 64, 32, 16, 8))
    tkv = tkv or _pick_tile(S, (256, 128, 64, 32, 16, 8))
    assert S % tq == 0 and S % tkv == 0
    nq, nkv = S // tq, S // tkv

    attn_kernel = functools.partial(flash_attn_kernel, scale=float(hd) ** -0.5)
    ctx = pl.pallas_call(
        attn_kernel,
        out_shape=jax.ShapeDtypeStruct((B, n_heads, S, hd), bf16),
        grid_spec=pltpu.PrefetchScalarGridSpec(
            num_scalar_prefetch=0,
            grid=(B, n_heads, nq, nkv),                    # reduction (kv) axis last
            in_specs=[
                pl.BlockSpec((1, 1, tq, hd), lambda b, h, qi, ki: (b, h, qi, 0)),
                pl.BlockSpec((1, 1, tkv, hd), lambda b, h, qi, ki: (b, h, ki, 0)),
                pl.BlockSpec((1, 1, tkv, hd), lambda b, h, qi, ki: (b, h, ki, 0)),
            ],
            out_specs=pl.BlockSpec((1, 1, tq, hd), lambda b, h, qi, ki: (b, h, qi, 0)),
            scratch_shapes=[
                pltpu.VMEM((tq, 128), jnp.float32),        # running max m (lane-replicated)
                pltpu.VMEM((tq, 128), jnp.float32),        # running sum l (lane-replicated)
                pltpu.VMEM((tq, hd), jnp.float32),         # context accumulator
            ],
        ),
        compiler_params=pltpu.CompilerParams(
            dimension_semantics=("parallel", "parallel", "parallel", "arbitrary"),
            vmem_limit_bytes=_VMEM_LIMIT),
        cost_estimate=pl.CostEstimate(
            flops=4 * B * n_heads * S * S * hd,
            transcendentals=B * n_heads * S * S,
            bytes_accessed=B * S * D * 2 * (2 + 2 * nq)),
    )(q, k, v)

    ctx2d = ctx.transpose(0, 2, 1, 3).reshape(R, D)        # back to head-concat (B*S, D)

    # -------- Kernel 3: O-proj + LN1 + Dff-tiled FFN + LN2 over row tiles --------
    tdff = dff_tile or _pick_tile(Dff, (512, 256, 128))
    assert Dff % tdff == 0
    out2d = pl.pallas_call(
        oproj_ffn_kernel,
        out_shape=jax.ShapeDtypeStruct((R, D), x.dtype),
        grid_spec=pltpu.PrefetchScalarGridSpec(
            num_scalar_prefetch=0,
            grid=(R // tr, Dff // tdff),                   # Dff reduction axis last
            in_specs=[
                pl.BlockSpec((tr, D), lambda r, f: (r, 0)),     # x (residual)
                pl.BlockSpec((tr, D), lambda r, f: (r, 0)),     # ctx (attention output)
                pl.BlockSpec((D, D), lambda r, f: (0, 0)),      # wo
                pl.BlockSpec((1, D), lambda r, f: (0, 0)),      # bo
                pl.BlockSpec((1, D), lambda r, f: (0, 0)),      # gamma1
                pl.BlockSpec((1, D), lambda r, f: (0, 0)),      # beta1
                pl.BlockSpec((D, tdff), lambda r, f: (0, f)),   # w1 column tile
                pl.BlockSpec((1, tdff), lambda r, f: (0, f)),   # b1 tile
                pl.BlockSpec((tdff, D), lambda r, f: (f, 0)),   # w2 row tile
                pl.BlockSpec((1, D), lambda r, f: (0, 0)),      # b2
                pl.BlockSpec((1, D), lambda r, f: (0, 0)),      # gamma2
                pl.BlockSpec((1, D), lambda r, f: (0, 0)),      # beta2
            ],
            out_specs=pl.BlockSpec((tr, D), lambda r, f: (r, 0)),
            scratch_shapes=[
                pltpu.VMEM((tr, D), jnp.float32),               # x1 (post-LN1) resident
                pltpu.VMEM((tr, D), jnp.float32),               # FFN accumulator
            ],
        ),
        compiler_params=pltpu.CompilerParams(
            dimension_semantics=("parallel", "arbitrary"),
            vmem_limit_bytes=_VMEM_LIMIT),
        cost_estimate=pl.CostEstimate(
            flops=2 * R * D * D + 4 * R * D * Dff,
            transcendentals=2 * R,
            bytes_accessed=R * D * 4 + R * D * 2 + D * D * 2 + 2 * D * Dff * 2 + R * D * 4),
    )(x2d, ctx2d, wo, params['bo'], params['g1'], params['be1'],
      w1, params['b1'], w2, params['b2'], params['g2'], params['be2'])

    return out2d.reshape(B, S, D)


def reference_forward(x, params, n_heads):
    # Pure-JAX f32 reference mirroring the PyTorch forward.
    B, S, D = x.shape
    hd = D // n_heads

    def ln(y, g, b, eps=1e-5):
        m = jnp.mean(y, axis=-1, keepdims=True)
        v = jnp.mean((y - m) ** 2, axis=-1, keepdims=True)
        return (y - m) / jnp.sqrt(v + eps) * g + b

    q = x @ params['wq'] + params['bq']
    k = x @ params['wk'] + params['bk']
    v = x @ params['wv'] + params['bv']
    q = q.reshape(B, S, n_heads, hd).transpose(0, 2, 1, 3)
    k = k.reshape(B, S, n_heads, hd).transpose(0, 2, 1, 3)
    v = v.reshape(B, S, n_heads, hd).transpose(0, 2, 1, 3)
    scores = jnp.einsum('bhqd,bhkd->bhqk', q, k) / jnp.sqrt(jnp.float32(hd))
    w = jax.nn.softmax(scores, axis=-1)
    ctx = jnp.einsum('bhqk,bhkd->bhqd', w, v).transpose(0, 2, 1, 3).reshape(B, S, D)
    attn_out = ctx @ params['wo'] + params['bo']
    x1 = ln(x + attn_out, params['g1'], params['be1'])
    h = jnp.maximum(x1 @ params['w1'] + params['b1'], 0.0)
    ffn_out = h @ params['w2'] + params['b2']
    return ln(x1 + ffn_out, params['g2'], params['be2'])


if __name__ == "__main__":
    # Small shapes consistent with TransformerLayer(d_model=64, n_heads=4): B=2, S=32.
    B, S, D, H = 2, 32, 64, 4
    Dff = 4 * D

    key = jax.random.PRNGKey(0)
    keys = jax.random.split(key, 16)

    def init(k, shape, scale=0.05):
        return (scale * jax.random.normal(k, shape)).astype(jnp.float32)

    params = {
        'wq': init(keys[0], (D, D)),   'bq': init(keys[1], (1, D)),
        'wk': init(keys[2], (D, D)),   'bk': init(keys[3], (1, D)),
        'wv': init(keys[4], (D, D)),   'bv': init(keys[5], (1, D)),
        'wo': init(keys[6], (D, D)),   'bo': init(keys[7], (1, D)),
        'g1': jnp.ones((1, D), jnp.float32),  'be1': jnp.zeros((1, D), jnp.float32),
        'w1': init(keys[8], (D, Dff)), 'b1': init(keys[9], (1, Dff)),
        'w2': init(keys[10], (Dff, D)), 'b2': init(keys[11], (1, D)),
        'g2': jnp.ones((1, D), jnp.float32),  'be2': jnp.zeros((1, D), jnp.float32),
    }

    x = jax.random.normal(keys[12], (B, S, D), dtype=jnp.float32)

    # Force multiple q/kv tiles and multiple Dff tiles so the online-softmax and
    # Dff-reduction accumulation paths are exercised.
    out = transformer_layer(x, params, n_heads=H, tq=16, tkv=16, dff_tile=128)
    out = jax.block_until_ready(out)

    ref = reference_forward(x, params, n_heads=H)
    assert out.shape == (B, S, D)
    # bf16 MXU inputs (f32 accumulation) vs. the pure-f32 reference -> looser tolerance.
    assert jnp.allclose(out, ref, atol=3e-2, rtol=3e-2), "Pallas output mismatch vs reference"

    print("KERNEL_OK")
</pallas_src>

<mosaic_0001>
module attributes {stable_mosaic.version = 11 : i64} {
  func.func @qkv_proj_kernel(%arg0: i32, %arg1: memref<64x64xf32, #tpu.memory_space<vmem>>, %arg2: memref<64x192xbf16, #tpu.memory_space<vmem>>, %arg3: memref<1x192xf32, #tpu.memory_space<vmem>>, %arg4: memref<64x192xbf16, #tpu.memory_space<vmem>>) attributes {dimension_semantics = [#tpu.dimension_semantics<parallel>], iteration_bounds = array<i64: 1>, scalar_prefetch = 0 : i64, scratch_operands = 0 : i64, tpu.core_type = #tpu.core_type<tc>, window_params = [{transform_indices = @transform_0, window_bounds = array<i64: 64, 64>}, {pipeline_mode = #tpu.pipeline_mode<synchronous>, transform_indices = @transform_1, window_bounds = array<i64: 64, 192>}, {pipeline_mode = #tpu.pipeline_mode<synchronous>, transform_indices = @transform_2, window_bounds = array<i64: 1, 192>}, {transform_indices = @transform_3, window_bounds = array<i64: 64, 192>}]} {
    %c0 = arith.constant 0 : index
    %c0_0 = arith.constant 0 : index
    %0 = vector.load %arg1[%c0, %c0_0] : memref<64x64xf32, #tpu.memory_space<vmem>>, vector<64x64xf32>
    %1 = arith.truncf %0 : vector<64x64xf32> to vector<64x64xbf16>
    %c0_1 = arith.constant 0 : index
    %c0_2 = arith.constant 0 : index
    %2 = vector.load %arg2[%c0_1, %c0_2] : memref<64x192xbf16, #tpu.memory_space<vmem>>, vector<64x192xbf16>
    %cst = arith.constant dense<0.000000e+00> : vector<64x192xf32>
    %3 = tpu.matmul %1, %2, %cst {dimension_numbers = #tpu.dot_dimension_numbers<[1], [0], [0], [1], [0, 0, 1, 1], [], []>} : vector<64x64xbf16>, vector<64x192xbf16>, vector<64x192xf32> -> vector<64x192xf32>
    %c0_3 = arith.constant 0 : index
    %c0_4 = arith.constant 0 : index
    %4 = vector.load %arg3[%c0_3, %c0_4] : memref<1x192xf32, #tpu.memory_space<vmem>>, vector<1x192xf32>
    %5 = vector.broadcast %4 : vector<1x192xf32> to vector<64x192xf32>
    %6 = arith.addf %3, %5 : vector<64x192xf32>
    %7 = arith.truncf %6 : vector<64x192xf32> to vector<64x192xbf16>
    %c0_5 = arith.constant 0 : index
    %c0_6 = arith.constant 0 : index
    %8 = vector.load %arg4[%c0_5, %c0_6] : memref<64x192xbf16, #tpu.memory_space<vmem>>, vector<64x192xbf16>
    tpu.vector_store %arg4[%c0_5, %c0_6], %7 {strides = array<i32>} : memref<64x192xbf16, #tpu.memory_space<vmem>>, vector<64x192xbf16>,
    return
  }
  func.func @transform_0(%arg0: i32) -> (i32, i32) {
    %c0_i32 = arith.constant 0 : i32
    %c0_i32_0 = arith.constant 0 : i32
    return %arg0, %c0_i32 : i32, i32
  }
  func.func @transform_1(%arg0: i32) -> (i32, i32) {
    %c0_i32 = arith.constant 0 : i32
    %c0_i32_0 = arith.constant 0 : i32
    %c0_i32_1 = arith.constant 0 : i32
    return %c0_i32, %c0_i32_0 : i32, i32
  }
  func.func @transform_2(%arg0: i32) -> (i32, i32) {
    %c0_i32 = arith.constant 0 : i32
    %c0_i32_0 = arith.constant 0 : i32
    %c0_i32_1 = arith.constant 0 : i32
    return %c0_i32, %c0_i32_0 : i32, i32
  }
  func.func @transform_3(%arg0: i32) -> (i32, i32) {
    %c0_i32 = arith.constant 0 : i32
    %c0_i32_0 = arith.constant 0 : i32
    return %arg0, %c0_i32 : i32, i32
  }
}

</mosaic_0001>

<llo_original>
// kernel: tpu_custom_call.1
$region0: #{tpu_custom_call.1}
  #allocation0 [shape = 'u32[]', space=smem, size = 0x4, offset = 0x4, fixed_abs, tag = 'smem constant byte address 0x4 - core index']
  #allocation1 [shape = 'u32[72,128]{1,0:T(1,128)}', space=vmem, size = 0x9000, scoped, tag = 'internal scratch']
  %s0 = inlined_call_operand.hbm [shape: f32[64,64], index: 0, kind: input, shape index: {}]
  %s1 = inlined_call_operand.hbm [shape: bf16[64,192], index: 1, kind: input, shape index: {}]
  %s2 = inlined_call_operand.hbm [shape: f32[1,192], index: 2, kind: input, shape index: {}]
  %s3 = inlined_call_operand.hbm [shape: bf16[64,192], index: 3, kind: output, shape index: {}]
  %s4 = sld [smem:[#allocation0]]
  $region34: #{tpu_custom_call.1} parent=0
    _
  %s6 = ssub.s32 1, %s4
  %s7 = scalar_select 0, %s6, %s4
  $region1: #{tpu_custom_call.1} parent=0
    #allocation2 [shape = 'u8[32768]{0}', space=vmem, size = 0x8000, scoped, tag = 'input window, operand 0, single buffered']
    #allocation3 [shape = 's32[1]{0}', space=sflag, size = 0x4, scoped, tag = 'scoped memory for tpu_custom_call.1']
    #allocation4 [shape = 's32[1]{0}', space=sflag, size = 0x4, scoped, tag = 'scoped memory for tpu_custom_call.1']
    #allocation5 [shape = 'u8[32768]{0}', space=vmem, size = 0x8000, scoped, tag = 'input window, operand 1, single buffered']
    #allocation6 [shape = 's32[1]{0}', space=sflag, size = 0x4, scoped, tag = 'scoped memory for tpu_custom_call.1']
    #allocation7 [shape = 'u8[1024]{0}', space=vmem, size = 0x400, scoped, tag = 'input window, operand 2, single buffered']
    #allocation8 [shape = 'u8[32768]{0}', space=vmem, size = 0x8000, scoped, tag = 'output window, operand 0, single buffered']
    %8 = vsyncpa [#allocation3], 0
    %9 = vsyncpa [#allocation6], 0
    %10 = vsyncpa [#allocation4], 0
    // Predicated region
    $region2: #{tpu_custom_call.1} parent=1 // pred_check
      _
    $region3: #{tpu_custom_call.1} parent=1 // pred_check_branch
      %12 = sbr.rel (0) target = $region5
    $region4: #{tpu_custom_call.1} parent=1 // pred_region
      %14 = vsyncadd [#allocation3], 0
      %s15 = sshll.u32 %s0, 4
      %s16 = int_to_ptr.hbm [resolvable:$true] %s15
      %s17 = sshll.u32 [#allocation2], 4
      %s18 = int_to_ptr.vmem [resolvable:$true] %s17
      %23 = dma.hbm_to_vmem [thread:$0]  %s16, 1024, %s18, [#allocation3], 128, 128, 8
    $region5: #{tpu_custom_call.1} parent=1 // pred_fallthru
      _
    // Predicated region
    $region6: #{tpu_custom_call.1} parent=1 // pred_check
      _
    $region7: #{tpu_custom_call.1} parent=1 // pred_check_branch
      %25 = sbr.rel (0) target = $region9
    $region8: #{tpu_custom_call.1} parent=1 // pred_region
      %27 = vsyncadd [#allocation6], 0
      %s28 = sshll.u32 %s1, 4
      %s29 = int_to_ptr.hbm [resolvable:$true] %s28
      %s30 = sshll.u32 [#allocation5], 4
      %s31 = int_to_ptr.vmem [resolvable:$true] %s30
      %36 = dma.hbm_to_vmem [thread:$0]  %s29, 1024, %s31, [#allocation6], 128, 128, 8
    $region9: #{tpu_custom_call.1} parent=1 // pred_fallthru
      _
    // Predicated region
    $region10: #{tpu_custom_call.1} parent=1 // pred_check
      _
    $region11: #{tpu_custom_call.1} parent=1 // pred_check_branch
      %38 = sbr.rel (0) target = $region13
    $region12: #{tpu_custom_call.1} parent=1 // pred_region
      %40 = vsyncadd [#allocation6], 0
      %s42 = sshll.u32 %s2, 4
      %s43 = int_to_ptr.hbm [resolvable:$true] %s42
      %s44 = sshll.u32 [#allocation7], 4
      %s45 = int_to_ptr.vmem [resolvable:$true] %s44
      %47 = dma.hbm_to_vmem [thread:$0]  %s43, 32, %s45, [#allocation6]
    $region13: #{tpu_custom_call.1} parent=1 // pred_fallthru
      _
    // Predicated region
    $region14: #{tpu_custom_call.1} parent=1 // pred_check
      _
    $region15: #{tpu_custom_call.1} parent=1 // pred_check_branch
      %49 = sbr.rel (0) target = $region17
    $region16: #{tpu_custom_call.1} parent=1 // pred_region
      %51 = dma.done [#allocation3], 1024
    $region17: #{tpu_custom_call.1} parent=1 // pred_fallthru
      _
    // Predicated region
    $region18: #{tpu_custom_call.1} parent=1 // pred_check
      _
    $region19: #{tpu_custom_call.1} parent=1 // pred_check_branch
      %53 = sbr.rel (0) target = $region21
    $region20: #{tpu_custom_call.1} parent=1 // pred_region
      %55 = dma.done [#allocation6], 1024
    $region21: #{tpu_custom_call.1} parent=1 // pred_fallthru
      _
    // Predicated region
    $region22: #{tpu_custom_call.1} parent=1 // pred_check
      _
    $region23: #{tpu_custom_call.1} parent=1 // pred_check_branch
      %57 = sbr.rel (0) target = $region25
    $region24: #{tpu_custom_call.1} parent=1 // pred_region
      %59 = dma.done [#allocation6], 32
    $region25: #{tpu_custom_call.1} parent=1 // pred_fallthru
      _
    %v61 = vld [vmem:[#allocation2] sm:$0xff]
    %v62 = vld [vmem:[#allocation2 + $0x8] sm:$0xff]
    %v63 = vld [vmem:[#allocation2 + $0x10] sm:$0xff]
    %v64 = vld [vmem:[#allocation2 + $0x18] sm:$0xff]
    %v65 = vld [vmem:[#allocation2 + $0x20] sm:$0xff]
    %v66 = vld [vmem:[#allocation2 + $0x28] sm:$0xff]
    %v67 = vld [vmem:[#allocation2 + $0x30] sm:$0xff]
    %v68 = vld [vmem:[#allocation2 + $0x38] sm:$0xff]
    %v69 = vpack.c.bf16 %v62, %v61
    %v70 = vpack.c.bf16 %v64, %v63
    %v71 = vpack.c.bf16 %v66, %v65
    %v72 = vpack.c.bf16 %v68, %v67
    %v73 = vld [vmem:[#allocation5] sm:$0xff]
    %v74 = vld [vmem:[#allocation5 + $0x8] sm:$0xff]
    %v75 = vld [vmem:[#allocation5 + $0x10] sm:$0xff]
    %v76 = vld [vmem:[#allocation5 + $0x18] sm:$0xff]
    %v77 = vld [vmem:[#allocation5 + $0x20] sm:$0xff]
    %v78 = vld [vmem:[#allocation5 + $0x28] sm:$0xff]
    %v79 = vld [vmem:[#allocation5 + $0x30] sm:$0xff]
    %v80 = vld [vmem:[#allocation5 + $0x38] sm:$0xff]
    %v81 = vld [vmem:[#allocation7] sm:$0x3]
    %v83 = vperm.slane %v81, 0
    %v84 = vperm.slane %v81, 1
    %v95 = vunpack.c.l.b16 %v73
    %v96 = vunpack.c.h.b16 %v73
    %v97 = vunpack.c.l.b16 %v74
    %v98 = vunpack.c.h.b16 %v74
    %v99 = vunpack.c.l.b16 %v75
    %v100 = vunpack.c.h.b16 %v75
    %v101 = vunpack.c.l.b16 %v76
    %v102 = vunpack.c.h.b16 %v76
    %v103 = vunpack.c.l.b16 %v77
    %v104 = vunpack.c.h.b16 %v77
    %v105 = vunpack.c.l.b16 %v78
    %v106 = vunpack.c.h.b16 %v78
    %v107 = vunpack.c.l.b16 %v79
    %v108 = vunpack.c.h.b16 %v79
    %v109 = vunpack.c.l.b16 %v80
    %v110 = vunpack.c.h.b16 %v80
    %v111 = vpack.c.b16 %v97, %v95
    %v112 = vpack.c.b16 %v98, %v96
    %v113 = vpack.c.b16 %v101, %v99
    %v114 = vpack.c.b16 %v102, %v100
    %v115 = vpack.c.b16 %v105, %v103
    %v116 = vpack.c.b16 %v106, %v104
    %v117 = vpack.c.b16 %v109, %v107
    %v118 = vpack.c.b16 %v110, %v108
    %vm127 = vcmask 523264
    %v129 = vsel %vm127, %v69, 0
    %v132 = vsel %vm127, %v70, 0
    %v135 = vsel %vm127, %v71, 0
    %v138 = vsel %vm127, %v72, 0
    %140 = vmatpush.bf16.msra.mxu0 0
    %141 = vmatpush.bf16.msra.mxu0 0
    %142 = vmatpush.bf16.msra.mxu0 0
    %143 = vmatpush.bf16.msra.mxu0 0
    %144 = vmatpush.bf16.msra.mxu0 %v117
    %145 = vmatpush.bf16.msra.mxu0 %v115
    %146 = vmatpush.bf16.msra.mxu0 %v113
    %147 = vmatpush.bf16.msra.mxu0 %v111
    %148 = vmatmul.bf16.gmra.mxu0 %v129
    %v149 = vpop.f32.mrf.mxu0
    %v150 = vadd.f32 %v83, %v149
    %v151 = vpop.f32.mrf.mxu0
    %v152 = vadd.f32 %v83, %v151
    %153 = vmatmul.bf16.gmra.mxu0 %v132
    %v154 = vpop.f32.mrf.mxu0
    %v155 = vadd.f32 %v83, %v154
    %v156 = vpop.f32.mrf.mxu0
    %v157 = vadd.f32 %v83, %v156
    %158 = vmatmul.bf16.gmra.mxu0 %v135
    %v159 = vpop.f32.mrf.mxu0
    %v160 = vadd.f32 %v83, %v159
    %v161 = vpop.f32.mrf.mxu0
    %v162 = vadd.f32 %v83, %v161
    %163 = vmatmul.bf16.gmra.mxu0 %v138
    %v164 = vpop.f32.mrf.mxu0
    %v165 = vadd.f32 %v83, %v164
    %v166 = vpop.f32.mrf.mxu0
    %v167 = vadd.f32 %v83, %v166
    %168 = vdwg.mxu0
    %169 = vmatpush.bf16.msra.mxu0 0
    %170 = vmatpush.bf16.msra.mxu0 0
    %171 = vmatpush.bf16.msra.mxu0 0
    %172 = vmatpush.bf16.msra.mxu0 0
    %173 = vmatpush.bf16.msra.mxu0 %v118
    %174 = vmatpush.bf16.msra.mxu0 %v116
    %175 = vmatpush.bf16.msra.mxu0 %v114
    %176 = vmatpush.bf16.msra.mxu0 %v112
    %177 = vmatmul.bf16.gmra.mxu0 %v129
    %v178 = vpop.f32.mrf.mxu0
    %v179 = vadd.f32 %v84, %v178
    %v180 = vpop.f32.mrf.mxu0
    %v181 = vadd.f32 %v84, %v180
    %182 = vmatmul.bf16.gmra.mxu0 %v132
    %v183 = vpop.f32.mrf.mxu0
    %v184 = vadd.f32 %v84, %v183
    %v185 = vpop.f32.mrf.mxu0
    %v186 = vadd.f32 %v84, %v185
    %187 = vmatmul.bf16.gmra.mxu0 %v135
    %v188 = vpop.f32.mrf.mxu0
    %v189 = vadd.f32 %v84, %v188
    %v190 = vpop.f32.mrf.mxu0
    %v191 = vadd.f32 %v84, %v190
    %192 = vmatmul.bf16.gmra.mxu0 %v138
    %v193 = vpop.f32.mrf.mxu0
    %v194 = vadd.f32 %v84, %v193
    %v195 = vpop.f32.mrf.mxu0
    %v196 = vadd.f32 %v84, %v195
    %197 = vdwg.mxu0
    %v198 = vpack.c.bf16 %v179, %v150
    %v199 = vpack.c.bf16 %v181, %v152
    %v200 = vpack.c.bf16 %v184, %v155
    %v201 = vpack.c.bf16 %v186, %v157
    %v202 = vpack.c.bf16 %v189, %v160
    %v203 = vpack.c.bf16 %v191, %v162
    %v204 = vpack.c.bf16 %v194, %v165
    %v205 = vpack.c.bf16 %v196, %v167
    %vm206 = vcmask 1043456
    %vm207 = vcmask 523268
    %vm208 = vmor %vm207, %vm206
    %209 = vst.msk [vmem:[#allocation8] sm:$0xff] %vm208, %v198
    %210 = vst.msk [vmem:[#allocation8 + $0x8] sm:$0xff] %vm208, %v199
    %211 = vst.msk [vmem:[#allocation8 + $0x10] sm:$0xff] %vm208, %v200
    %212 = vst.msk [vmem:[#allocation8 + $0x18] sm:$0xff] %vm208, %v201
    %213 = vst.msk [vmem:[#allocation8 + $0x20] sm:$0xff] %vm208, %v202
    %214 = vst.msk [vmem:[#allocation8 + $0x28] sm:$0xff] %vm208, %v203
    %215 = vst.msk [vmem:[#allocation8 + $0x30] sm:$0xff] %vm208, %v204
    %216 = vst.msk [vmem:[#allocation8 + $0x38] sm:$0xff] %vm208, %v205
    // Predicated region
    $region26: #{tpu_custom_call.1} parent=1 // pred_check
      _
    $region27: #{tpu_custom_call.1} parent=1 // pred_check_branch
      %218 = sbr.rel (0) target = $region29
    $region28: #{tpu_custom_call.1} parent=1 // pred_region
      %220 = vsyncadd [#allocation4], 0
      %s221 = sshll.u32 [#allocation8], 4
      %s222 = int_to_ptr.vmem [resolvable:$true] %s221
      %s223 = sshll.u32 %s3, 4
      %s224 = int_to_ptr.hbm [resolvable:$true] %s223
      %229 = dma.vmem_to_hbm [thread:$0]  %s222, 1024, %s224, [#allocation4], 128, 128, 8
    $region29: #{tpu_custom_call.1} parent=1 // pred_fallthru
      _
    // Predicated region
    $region30: #{tpu_custom_call.1} parent=1 // pred_check
      _
    $region31: #{tpu_custom_call.1} parent=1 // pred_check_branch
      %231 = sbr.rel (0) target = $region33
    $region32: #{tpu_custom_call.1} parent=1 // pred_region
      %233 = dma.done [#allocation4], 1024
    $region33: #{tpu_custom_call.1} parent=1 // pred_fallthru
      _
    %234 = vsyncpa [#allocation3], 1
    %235 = vsyncpa [#allocation6], 1
    %236 = vsyncpa [#allocation4], 1

</llo_original>
